<compile_context>
chip_gen: v7x
topology: tpu7x:2x2x1
jax: 0.10.0
libtpu: 0.0.40
codegen_flags: <defaults>
</compile_context>

<pallas_src>
import jax
import jax.numpy as jnp
from jax.experimental import pallas as pl
from jax.experimental.pallas import tpu as pltpu


# ---------------------------------------------------------------------------
# Kernels
# ---------------------------------------------------------------------------
def _linear_kernel_single_k(x_ref, w_ref, b_ref, o_ref):
    # x_ref: (TM, F)  w_ref: (F, TN)  b_ref: (1, TN)  o_ref: (TM, TN)
    # Single K step: no accumulator scratch, write the result directly.
    acc = jnp.dot(x_ref[...], w_ref[...], preferred_element_type=jnp.float32)
    o_ref[...] = (acc + b_ref[...].astype(jnp.float32)).astype(o_ref.dtype)


def _linear_kernel_multi_k(x_ref, w_ref, b_ref, o_ref, acc_ref):
    # x_ref: (TM, TK)  w_ref: (TK, TN)  b_ref: (1, TN)  o_ref: (TM, TN)
    # acc_ref: (TM, TN) f32 scratch, resident across the K grid axis.
    # Only used when num_programs(2) >= 2.
    k = pl.program_id(2)
    nk = pl.num_programs(2)
    partial = jnp.dot(x_ref[...], w_ref[...], preferred_element_type=jnp.float32)

    @pl.when(k == 0)
    def _():
        acc_ref[...] = partial                       # no separate zero-fill

    @pl.when(jnp.logical_and(k > 0, k < nk - 1))
    def _():
        acc_ref[...] += partial

    @pl.when(k == nk - 1)
    def _():
        # Fused epilogue: last partial product never round-trips through VMEM.
        o_ref[...] = (
            acc_ref[...] + partial + b_ref[...].astype(jnp.float32)
        ).astype(o_ref.dtype)


# ---------------------------------------------------------------------------
# Tiling / launch helpers
# ---------------------------------------------------------------------------
_MAX_TILE_K = 2048          # contract F in one shot up to this; else K-tile at 512
_K_TILE = 512               # multiple of 256 -> fills v6e/v7x MXU depth
_MAX_TILE_N = 512
_FALLBACK_FLOPS = 2 * 1024 * 1024   # below this a pallas_call is pure overhead


def _round_up(x, m):
    return ((x + m - 1) // m) * m


def _vmem_config():
    """(tile working-set budget, scoped-VMEM limit, max row tile) per TPU gen."""
    try:
        vmem_bytes = int(pltpu.get_tpu_info().vmem_capacity_bytes)
    except Exception:
        vmem_bytes = 64 * 1024 * 1024           # be conservative if unknown
    if vmem_bytes >= 100 * 1024 * 1024:          # v5e / v6e: 128 MiB physical
        return 64 * 1024 * 1024, 96 * 1024 * 1024, 1024
    # v7x: 64 MiB per TensorCore -- keep tiles conservative.
    return 28 * 1024 * 1024, 48 * 1024 * 1024, 512


def _choose_tiles(R, F, O_pad, itemsize, budget, max_rows_cap, force_tile_k=None):
    # ---- N tile: multiple of 128; whole O_pad if it is small, else 512/256.
    if O_pad <= _MAX_TILE_N:
        tile_n = O_pad
    else:
        tile_n = 128
        for cand in (512, 256, 128):
            if O_pad % cand == 0:
                tile_n = cand
                break

    # ---- K tile: single step (no accumulator) for the common F <= 2048 case.
    if force_tile_k is not None:                 # test hook for the multi-K path
        tile_k = force_tile_k
        F_pad = _round_up(F, tile_k)
    elif F <= _MAX_TILE_K:
        tile_k, F_pad = F, F
    else:
        tile_k = _K_TILE
        F_pad = _round_up(F, tile_k)
    multi_k = (F_pad // tile_k) > 1

    # ---- Row tile: largest dtype-aligned tile whose double-buffered working
    #      set fits the per-generation VMEM budget.
    row_align = {4: 8, 2: 16, 1: 32}.get(itemsize, 8)
    max_rows = max(min(max_rows_cap, _round_up(max(R, 1), row_align)), row_align)
    tile_rows = row_align
    for tr in range(max_rows, 0, -row_align):
        need = itemsize * (
            2 * (tr * tile_k + tile_k * tile_n + tr * tile_n)   # dbl-buffered x,w,out
            + 2 * tile_n                                        # bias
        )
        if multi_k:
            need += 4 * tr * tile_n                             # f32 accumulator
        if need <= budget:
            tile_rows = tr
            break

    # ---- Avoid a degenerate 1x1 parallel grid (would idle one v7x TensorCore;
    #      costs only one extra ~0.35us grid step on single-core chips).
    if pl.cdiv(R, tile_rows) * (O_pad // tile_n) == 1 and R >= 2 * row_align:
        tile_rows = _round_up(pl.cdiv(R, 2), row_align)

    return tile_rows, tile_n, tile_k, F_pad, multi_k


def _linear_pallas(x2d, w, b, *, cast_inputs_to_bf16=False, force_tile_k=None):
    """x2d: (R, F), w: (F, O), b: (O,) -> (R, O) via the Pallas kernel."""
    R, F = x2d.shape
    O = w.shape[1]
    out_dtype = x2d.dtype

    if cast_inputs_to_bf16:
        # Optional (accuracy-dependent): bf16 MXU inputs, f32 accumulation.
        x2d = x2d.astype(jnp.bfloat16)
        w = w.astype(jnp.bfloat16)

    itemsize = jnp.dtype(x2d.dtype).itemsize
    budget, vmem_limit, max_rows_cap = _vmem_config()

    O_pad = _round_up(O, 128)                 # lane-dense (unmasked) output stores
    tile_rows, tile_n, tile_k, F_pad, multi_k = _choose_tiles(
        R, F, O_pad, itemsize, budget, max_rows_cap, force_tile_k)

    # Rows are never padded: grid[0] = cdiv(R, tile_rows); Pallas masks the
    # partial edge block (garbage rows feed only output rows that are never
    # stored). x is zero-padded only along K (contributes 0 to the dot);
    # W / bias are tiny, so padding them along K / N is cheap.
    xp = x2d if F_pad == F else jnp.pad(x2d, ((0, 0), (0, F_pad - F)))
    wp = w if (F_pad == F and O_pad == O) else jnp.pad(
        w, ((0, F_pad - F), (0, O_pad - O)))
    bp = (b if O_pad == O else jnp.pad(b, (0, O_pad - O))).reshape(1, O_pad)

    gm = pl.cdiv(R, tile_rows)
    gn = O_pad // tile_n
    gk = F_pad // tile_k

    cost = pl.CostEstimate(
        flops=2 * R * F * O,
        # W is re-streamed once per row tile; x read once; output written once.
        bytes_accessed=(R * F_pad + F_pad * O_pad * gm + R * O_pad + O_pad) * itemsize,
        transcendentals=0,
    )

    if not multi_k:
        out = pl.pallas_call(
            _linear_kernel_single_k,
            out_shape=jax.ShapeDtypeStruct((R, O_pad), out_dtype),
            grid_spec=pltpu.PrefetchScalarGridSpec(
                num_scalar_prefetch=0,
                grid=(gm, gn),
                in_specs=[
                    pl.BlockSpec((tile_rows, tile_k), lambda i, j: (i, 0)),  # x
                    pl.BlockSpec((tile_k, tile_n), lambda i, j: (0, j)),     # w
                    pl.BlockSpec((1, tile_n), lambda i, j: (0, j)),          # bias
                ],
                out_specs=pl.BlockSpec((tile_rows, tile_n), lambda i, j: (i, j)),
            ),
            compiler_params=pltpu.CompilerParams(
                dimension_semantics=("parallel", "parallel"),
                vmem_limit_bytes=vmem_limit,
            ),
            cost_estimate=cost,
        )(xp, wp, bp)
    else:
        out = pl.pallas_call(
            _linear_kernel_multi_k,
            out_shape=jax.ShapeDtypeStruct((R, O_pad), out_dtype),
            grid_spec=pltpu.PrefetchScalarGridSpec(
                num_scalar_prefetch=0,
                grid=(gm, gn, gk),
                in_specs=[
                    pl.BlockSpec((tile_rows, tile_k), lambda i, j, k: (i, k)),  # x
                    pl.BlockSpec((tile_k, tile_n), lambda i, j, k: (k, j)),     # w
                    pl.BlockSpec((1, tile_n), lambda i, j, k: (0, j)),          # bias
                ],
                out_specs=pl.BlockSpec((tile_rows, tile_n), lambda i, j, k: (i, j)),
                scratch_shapes=[pltpu.VMEM((tile_rows, tile_n), jnp.float32)],
            ),
            compiler_params=pltpu.CompilerParams(
                dimension_semantics=("parallel", "parallel", "arbitrary"),
                vmem_limit_bytes=vmem_limit,
            ),
            cost_estimate=cost,
        )(xp, wp, bp)

    return out if O_pad == O else out[:, :O]


def _apply_linear(x2d, w, b, allow_fallback, cast_inputs_to_bf16=False):
    R, F = x2d.shape
    O = w.shape[1]
    if allow_fallback and 2 * R * F * O < _FALLBACK_FLOPS:
        # Tiny problem: a pallas_call is pure launch / DMA-descriptor overhead.
        y = jnp.dot(x2d, w, preferred_element_type=jnp.float32) + b
        return y.astype(x2d.dtype)
    return _linear_pallas(x2d, w, b, cast_inputs_to_bf16=cast_inputs_to_bf16)


# ---------------------------------------------------------------------------
# TimeDistributed wrapper (matches the PyTorch module's forward)
# ---------------------------------------------------------------------------
def time_distributed_linear(x, w, b, *, batch_first=True, allow_fallback=True,
                            cast_inputs_to_bf16=False):
    """JAX/Pallas equivalent of TimeDistributed(nn.Linear(F, O), batch_first)."""
    if x.ndim <= 2:
        # module applied directly (no time folding)
        x2d = x if x.ndim == 2 else x.reshape(1, -1)
        y = _apply_linear(x2d, w, b, allow_fallback, cast_inputs_to_bf16)
        return y if x.ndim == 2 else y.reshape(-1)

    F = x.shape[-1]
    x_reshaped = x.reshape(-1, F)                    # (B*T, F) — glue reshape
    y = _apply_linear(x_reshaped, w, b, allow_fallback, cast_inputs_to_bf16)
    O = y.shape[-1]
    if batch_first:
        return y.reshape(x.shape[0], -1, O)          # (B, T, O)
    else:
        return y.reshape(-1, x.shape[1], O)          # as in the torch code


# ---------------------------------------------------------------------------
# Demo / self-check
# ---------------------------------------------------------------------------
if __name__ == "__main__":
    key = jax.random.PRNGKey(0)
    kx, kw, kb, kx2, kx3, kw2, kb2, kx4 = jax.random.split(key, 8)

    # Shapes consistent with the module: batch=2, seq=8, features=32 -> out=64.
    B, T, F, O = 2, 8, 32, 64
    x = jax.random.normal(kx, (B, T, F), dtype=jnp.float32)
    bound = 1.0 / (F ** 0.5)
    w = jax.random.uniform(kw, (F, O), minval=-bound, maxval=bound, dtype=jnp.float32)
    b = jax.random.uniform(kb, (O,), minval=-bound, maxval=bound, dtype=jnp.float32)

    # Case 1: standard 3-D input, single-K-step kernel (forced Pallas path).
    y = time_distributed_linear(x, w, b, batch_first=True, allow_fallback=False)
    y = jax.block_until_ready(y)
    y_ref = (x.reshape(-1, F) @ w + b).reshape(B, T, O)
    assert y.shape == (B, T, O)
    assert jnp.allclose(y, y_ref, atol=1e-5, rtol=1e-5)

    # Case 2: B*T not a multiple of 8 — exercises the un-padded partial edge
    # row block (masked output store instead of wrapper padding).
    B2, T2 = 3, 5
    x2 = jax.random.normal(kx2, (B2, T2, F), dtype=jnp.float32)
    y2 = time_distributed_linear(x2, w, b, batch_first=True, allow_fallback=False)
    y2 = jax.block_until_ready(y2)
    y2_ref = (x2.reshape(-1, F) @ w + b).reshape(B2, T2, O)
    assert jnp.allclose(y2, y2_ref, atol=1e-5, rtol=1e-5)

    # Case 3: ndim <= 2 path (module applied directly).
    x3 = jax.random.normal(kx3, (5, F), dtype=jnp.float32)
    y3 = time_distributed_linear(x3, w, b, allow_fallback=False)
    y3 = jax.block_until_ready(y3)
    assert jnp.allclose(y3, x3 @ w + b, atol=1e-5, rtol=1e-5)

    # Case 4: force the multi-K (accumulator) kernel with a K tile of 128 on
    # F=320 (3 K steps, K zero-padding by 64) to validate the fused epilogue.
    F2 = 320
    x4 = jax.random.normal(kx4, (B * T, F2), dtype=jnp.float32)
    bound2 = 1.0 / (F2 ** 0.5)
    w2 = jax.random.uniform(kw2, (F2, O), minval=-bound2, maxval=bound2,
                            dtype=jnp.float32)
    b2 = jax.random.uniform(kb2, (O,), minval=-bound2, maxval=bound2,
                            dtype=jnp.float32)
    y4 = jax.block_until_ready(_linear_pallas(x4, w2, b2, force_tile_k=128))
    assert jnp.allclose(y4, x4 @ w2 + b2, atol=1e-4, rtol=1e-4)

    # Case 5: bf16 inputs — exercises the 16-row sublane alignment path.
    xb = x.astype(jnp.bfloat16)
    wb = w.astype(jnp.bfloat16)
    bb = b.astype(jnp.bfloat16)
    y5 = time_distributed_linear(xb, wb, bb, batch_first=True, allow_fallback=False)
    y5 = jax.block_until_ready(y5)
    y5_ref = (xb.reshape(-1, F).astype(jnp.float32) @ wb.astype(jnp.float32)
              + bb.astype(jnp.float32)).reshape(B, T, O)
    assert jnp.allclose(y5.astype(jnp.float32), y5_ref, atol=2e-2, rtol=2e-2)

    print("KERNEL_OK")
</pallas_src>

<mosaic_0001>
module attributes {stable_mosaic.version = 11 : i64} {
  func.func @_linear_kernel_single_k(%arg0: i32, %arg1: i32, %arg2: memref<8x32xf32, #tpu.memory_space<vmem>>, %arg3: memref<32x128xf32, #tpu.memory_space<vmem>>, %arg4: memref<1x128xf32, #tpu.memory_space<vmem>>, %arg5: memref<8x128xf32, #tpu.memory_space<vmem>>) attributes {dimension_semantics = [#tpu.dimension_semantics<parallel>, #tpu.dimension_semantics<parallel>], iteration_bounds = array<i64: 2, 1>, scalar_prefetch = 0 : i64, scratch_operands = 0 : i64, tpu.core_type = #tpu.core_type<tc>, window_params = [{transform_indices = @transform_0, window_bounds = array<i64: 8, 32>}, {transform_indices = @transform_1, window_bounds = array<i64: 32, 128>}, {transform_indices = @transform_2, window_bounds = array<i64: 1, 128>}, {transform_indices = @transform_3, window_bounds = array<i64: 8, 128>}]} {
    %c0 = arith.constant 0 : index
    %c0_0 = arith.constant 0 : index
    %0 = vector.load %arg2[%c0, %c0_0] : memref<8x32xf32, #tpu.memory_space<vmem>>, vector<8x32xf32>
    %c0_1 = arith.constant 0 : index
    %c0_2 = arith.constant 0 : index
    %1 = vector.load %arg3[%c0_1, %c0_2] : memref<32x128xf32, #tpu.memory_space<vmem>>, vector<32x128xf32>
    %cst = arith.constant dense<0.000000e+00> : vector<8x128xf32>
    %2 = tpu.matmul %0, %1, %cst {dimension_numbers = #tpu.dot_dimension_numbers<[1], [0], [0], [1], [0, 0, 1, 1], [], []>} : vector<8x32xf32>, vector<32x128xf32>, vector<8x128xf32> -> vector<8x128xf32>
    %c0_3 = arith.constant 0 : index
    %c0_4 = arith.constant 0 : index
    %3 = vector.load %arg4[%c0_3, %c0_4] : memref<1x128xf32, #tpu.memory_space<vmem>>, vector<1x128xf32>
    %4 = vector.broadcast %3 : vector<1x128xf32> to vector<8x128xf32>
    %5 = arith.addf %2, %4 : vector<8x128xf32>
    %c0_5 = arith.constant 0 : index
    %c0_6 = arith.constant 0 : index
    %6 = vector.load %arg5[%c0_5, %c0_6] : memref<8x128xf32, #tpu.memory_space<vmem>>, vector<8x128xf32>
    tpu.vector_store %arg5[%c0_5, %c0_6], %5 {strides = array<i32>} : memref<8x128xf32, #tpu.memory_space<vmem>>, vector<8x128xf32>,
    return
  }
  func.func @transform_0(%arg0: i32, %arg1: i32) -> (i32, i32) {
    %c0_i32 = arith.constant 0 : i32
    %c0_i32_0 = arith.constant 0 : i32
    return %arg0, %c0_i32 : i32, i32
  }
  func.func @transform_1(%arg0: i32, %arg1: i32) -> (i32, i32) {
    %c0_i32 = arith.constant 0 : i32
    %c0_i32_0 = arith.constant 0 : i32
    return %c0_i32, %arg1 : i32, i32
  }
  func.func @transform_2(%arg0: i32, %arg1: i32) -> (i32, i32) {
    %c0_i32 = arith.constant 0 : i32
    %c0_i32_0 = arith.constant 0 : i32
    return %c0_i32, %arg1 : i32, i32
  }
  func.func @transform_3(%arg0: i32, %arg1: i32) -> (i32, i32) {
    %c0_i32 = arith.constant 0 : i32
    return %arg0, %arg1 : i32, i32
  }
}

</mosaic_0001>

<llo_original>
// kernel: tpu_custom_call.1
$region0: #{tpu_custom_call.1}
  #allocation0 [shape = 'u32[]', space=smem, size = 0x4, offset = 0x4, fixed_abs, tag = 'smem constant byte address 0x4 - core index']
  #allocation1 [shape = 'u32[144,128]{1,0:T(1,128)}', space=vmem, size = 0x12000, scoped, tag = 'internal scratch']
  %s0 = inlined_call_operand.hbm [shape: f32[16,32], index: 0, kind: input, shape index: {}]
  %s1 = inlined_call_operand.hbm [shape: f32[32,128], index: 1, kind: input, shape index: {}]
  %s2 = inlined_call_operand.vmem [shape: f32[1,128], index: 2, kind: input, shape index: {}]
  %s3 = inlined_call_operand.hbm [shape: f32[16,128], index: 3, kind: output, shape index: {}]
  %s4 = sld [smem:[#allocation0]]
  $region53: #{tpu_custom_call.1} parent=0
    _
  %s6 = ssub.s32 1, %s4
  %s7 = scalar_select 0, %s6, %s4
  $region1: #{tpu_custom_call.1} parent=0
    #allocation2 [shape = 'u8[8192]{0}', space=vmem, size = 0x2000, scoped, tag = 'input window, operand 0']
    #allocation3 [shape = 's32[2]{0}', space=sflag, size = 0x8, scoped, tag = 'scoped memory for tpu_custom_call.1']
    #allocation4 [shape = 's32[2]{0}', space=sflag, size = 0x8, scoped, tag = 'scoped memory for tpu_custom_call.1']
    #allocation5 [shape = 'u8[16384]{0}', space=vmem, size = 0x4000, scoped, tag = 'input window, operand 1, single buffered']
    #allocation6 [shape = 's32[1]{0}', space=sflag, size = 0x4, scoped, tag = 'scoped memory for tpu_custom_call.1']
    #allocation7 [shape = 'u8[8192]{0}', space=vmem, size = 0x2000, scoped, tag = 'output window, operand 0']
    %8 = vsyncpa [#allocation3], 0
    %s9 = scalar_lea.sflag [#allocation3], 1
    %10 = vsyncpa %s9, 0
    %11 = vsyncpa [#allocation6], 0
    %12 = vsyncpa [#allocation4], 0
    %s13 = scalar_lea.sflag [#allocation4], 1
    %14 = vsyncpa %s13, 0
    loop: start=0, step=1, limit=4
    $region2: #{tpu_custom_call.1} parent=1 // loop_pre_header
      _
    $region3: #{tpu_custom_call.1} parent=1 // loop_header
      %s16 = sphi 0, %s20
      %p17 = scmp.ge.s32.totalorder %s16, 4
      %s23 = sphi 0, %s35
      %s24 = sphi 0, %s31
      %s25 = sphi 0, %s23
      %s26 = sphi 0, %s24
      %s27 = sphi 0, %s25
      %s28 = sphi 0, %s26
      %s38 = sphi 0, %s40
      %s41 = sphi 0, %s38
      %s42 = sphi 0, %s41
      %s58 = sphi 0, %s42
      %s64 = sphi 0, %s66
      %s67 = sphi 0, %s64
      %s68 = sphi 0, %s67
      %s84 = sphi 0, %s68
      %s90 = sphi 0, %s92
      %s93 = sphi 0, %s90
      %s94 = sphi 0, %s93
      %s110 = sphi 0, %s94
      %s118 = sphi 0, %s120
      %s121 = sphi 0, %s118
      %s122 = sphi 0, %s121
      %s138 = sphi 0, %s122
    $region4: #{tpu_custom_call.1} parent=1 // loop_header_branch
      %19 = sbr.rel (%p17) target = $region8
    $region5: #{tpu_custom_call.1} parent=1 // loop_body
      %s21 = ssub.s32 %s16, 1
      %s22 = ssub.s32 %s16, 2
      %s29 = sadd.s32 1, %s24
      %p30 = scmp.ge.s32.totalorder %s29, 1
      %s31 = scalar_select %p30, 0, %s29
      %s32 = sadd.s32 1, %s23
      %s33 = scalar_select %p30, %s32, %s23
      %p34 = scmp.ge.s32.totalorder %s33, 2
      %s35 = scalar_select %p34, 0, %s33
      %s36 = ssub.s32 %s23, %s35
      %p37 = scmp.eq.s32.totalorder %s36, 0
      %s39 = sadd.s32 %s38, 1
      %s40 = scalar_select %p37, %s38, %s39
      %p43 = pneg %p37
      %p44 = scmp.eq.s32.totalorder %s16, 1
      %p45 = por %p43, %p44
      %p46 = scmp.ne.s32.totalorder %s38, %s41
      %p47 = scmp.eq.s32.totalorder %s16, 0
      %p48 = por %p46, %p47
      %p49 = scmp.ne.s32.totalorder %s38, %s41
      %p50 = scmp.eq.s32.totalorder %s21, 1
      %p51 = por %p49, %p50
      %p52 = scmp.ne.s32.totalorder %s41, %s42
      %p53 = scmp.eq.s32.totalorder %s21, 0
      %p54 = por %p52, %p53
      %p55 = scmp.ne.s32.totalorder %s41, %s42
      %p56 = scmp.eq.s32.totalorder %s22, 1
      %p57 = por %p55, %p56
      %p59 = scmp.ne.s32.totalorder %s42, %s58
      %p60 = scmp.eq.s32.totalorder %s22, 0
      %p61 = por %p59, %p60
      %s62 = ssub.s32 %s24, %s31
      %p63 = scmp.eq.s32.totalorder %s62, 0
      %s65 = sadd.s32 %s64, 1
      %s66 = scalar_select %p63, %s64, %s65
      %p69 = pneg %p63
      %p70 = scmp.eq.s32.totalorder %s16, 1
      %p71 = por %p69, %p70
      %p72 = scmp.ne.s32.totalorder %s64, %s67
      %p73 = scmp.eq.s32.totalorder %s16, 0
      %p74 = por %p72, %p73
      %p75 = scmp.ne.s32.totalorder %s64, %s67
      %p76 = scmp.eq.s32.totalorder %s21, 1
      %p77 = por %p75, %p76
      %p78 = scmp.ne.s32.totalorder %s67, %s68
      %p79 = scmp.eq.s32.totalorder %s21, 0
      %p80 = por %p78, %p79
      %p81 = scmp.ne.s32.totalorder %s67, %s68
      %p82 = scmp.eq.s32.totalorder %s22, 1
      %p83 = por %p81, %p82
      %p85 = scmp.ne.s32.totalorder %s68, %s84
      %p86 = scmp.eq.s32.totalorder %s22, 0
      %p87 = por %p85, %p86
      %s88 = ssub.s32 %s24, %s31
      %p89 = scmp.eq.s32.totalorder %s88, 0
      %s91 = sadd.s32 %s90, 1
      %s92 = scalar_select %p89, %s90, %s91
      %p95 = pneg %p89
      %p96 = scmp.eq.s32.totalorder %s16, 1
      %p97 = por %p95, %p96
      %p98 = scmp.ne.s32.totalorder %s90, %s93
      %p99 = scmp.eq.s32.totalorder %s16, 0
      %p100 = por %p98, %p99
      %p101 = scmp.ne.s32.totalorder %s90, %s93
      %p102 = scmp.eq.s32.totalorder %s21, 1
      %p103 = por %p101, %p102
      %p104 = scmp.ne.s32.totalorder %s93, %s94
      %p105 = scmp.eq.s32.totalorder %s21, 0
      %p106 = por %p104, %p105
      %p107 = scmp.ne.s32.totalorder %s93, %s94
      %p108 = scmp.eq.s32.totalorder %s22, 1
      %p109 = por %p107, %p108
      %p111 = scmp.ne.s32.totalorder %s94, %s110
      %p112 = scmp.eq.s32.totalorder %s22, 0
      %p113 = por %p111, %p112
      %s114 = ssub.s32 %s23, %s35
      %s115 = ssub.s32 %s24, %s31
      %s116 = sor.u32 %s114, %s115
      %p117 = scmp.eq.s32.totalorder %s116, 0
      %s119 = sadd.s32 %s118, 1
      %s120 = scalar_select %p117, %s118, %s119
      %p123 = pneg %p117
      %p124 = scmp.eq.s32.totalorder %s16, 1
      %p125 = por %p123, %p124
      %p126 = scmp.ne.s32.totalorder %s118, %s121
      %p127 = scmp.eq.s32.totalorder %s16, 0
      %p128 = por %p126, %p127
      %p129 = scmp.ne.s32.totalorder %s118, %s121
      %p130 = scmp.eq.s32.totalorder %s21, 1
      %p131 = por %p129, %p130
      %p132 = scmp.ne.s32.totalorder %s121, %s122
      %p133 = scmp.eq.s32.totalorder %s21, 0
      %p134 = por %p132, %p133
      %p135 = scmp.ne.s32.totalorder %s121, %s122
      %p136 = scmp.eq.s32.totalorder %s22, 1
      %p137 = por %p135, %p136
      %p139 = scmp.ne.s32.totalorder %s122, %s138
      %p140 = scmp.eq.s32.totalorder %s22, 0
      %p141 = por %p139, %p140
      %p142 = scmp.le.s32.totalorder 1, %s16
      %p143 = scmp.lt.s32.totalorder %s16, 3
      %p144 = pnand %p142, %p143
      %p145 = pneg %p144
      // Predicated region
      $region9: #{tpu_custom_call.1} parent=5 // pred_check
        _
      $region10: #{tpu_custom_call.1} parent=5 // pred_check_branch
        %147 = sbr.rel (%p144) target = $region12
      $region11: #{tpu_custom_call.1} parent=5 // pred_region
        %s148 = ssub.s32 %s16, 1
        // Predicated region
        $region13: #{tpu_custom_call.1} parent=11 // pred_check
          %p149 = pneg %p80
        $region14: #{tpu_custom_call.1} parent=11 // pred_check_branch
          %151 = sbr.rel (%p149) target = $region16
        $region15: #{tpu_custom_call.1} parent=11 // pred_region
          %s153 = ssub.s32 512, 512
          %154 = vsyncadd [#allocation6], %s153
          %s155 = smul.addr %s26, 128
          %s156 = scalar_lea.hbm %s1, %s155
          %s157 = sshll.u32 [#allocation5], 4
          %s158 = int_to_ptr.vmem [resolvable:$true] %s157
          %163 = dma.hbm_to_vmem [thread:$0]  %s156, 512, %s158, [#allocation6], 128, 128, 8
        $region16: #{tpu_custom_call.1} parent=11 // pred_fallthru
          _
        // Predicated region
        $region17: #{tpu_custom_call.1} parent=11 // pred_check
          %p164 = pneg %p106
        $region18: #{tpu_custom_call.1} parent=11 // pred_check_branch
          %166 = sbr.rel (%p164) target = $region20
        $region19: #{tpu_custom_call.1} parent=11 // pred_region
          %p167 = scmp.lt.s32.totalorder %s26, 0
          %s168 = scalar_select %p167, %s26, 0
          %s169 = scalar_lea.vmem %s2, %s168
        $region20: #{tpu_custom_call.1} parent=11 // pred_fallthru
          _
      $region12: #{tpu_custom_call.1} parent=5 // pred_fallthru
        _
      %p170 = scmp.lt.s32.totalorder %s16, 2
      // Predicated region
      $region21: #{tpu_custom_call.1} parent=5 // pred_check
        %p171 = pneg %p170
      $region22: #{tpu_custom_call.1} parent=5 // pred_check_branch
        %173 = sbr.rel (%p171) target = $region24
      $region23: #{tpu_custom_call.1} parent=5 // pred_region
        // Predicated region
        $region25: #{tpu_custom_call.1} parent=23 // pred_check
          %p174 = pneg %p48
        $region26: #{tpu_custom_call.1} parent=23 // pred_check_branch
          %176 = sbr.rel (%p174) target = $region28
        $region27: #{tpu_custom_call.1} parent=23 // pred_region
          %s177 = sand.u32 %s38, 1
          %s178 = scalar_lea.sflag [#allocation3], %s177
          %s179 = sand.u32 %s38, 1
          %s180 = smul.addr %s179, 8
          %s181 = scalar_lea.vmem [#allocation2], %s180
          %s183 = ssub.s32 128, 128
          %184 = vsyncadd %s178, %s183
          %s185 = smul.addr %s23, 128
          %s186 = scalar_lea.hbm %s0, %s185
          %s188 = sshll.u32 %s181, 4
          %s189 = int_to_ptr.vmem [resolvable:$true] %s188
          %191 = dma.hbm_to_vmem [thread:$0]  %s186, 128, %s189, %s178
        $region28: #{tpu_custom_call.1} parent=23 // pred_fallthru
          _
      $region24: #{tpu_custom_call.1} parent=5 // pred_fallthru
        _
      %p192 = scmp.le.s32.totalorder 1, %s16
      %p193 = scmp.lt.s32.totalorder %s16, 3
      %p194 = pnand %p192, %p193
      %p195 = pneg %p194
      // Predicated region
      $region29: #{tpu_custom_call.1} parent=5 // pred_check
        _
      $region30: #{tpu_custom_call.1} parent=5 // pred_check_branch
        %197 = sbr.rel (%p194) target = $region32
      $region31: #{tpu_custom_call.1} parent=5 // pred_region
        %s198 = ssub.s32 %s16, 1
        %s199 = sand.u32 %s41, 1
        %s200 = scalar_lea.sflag [#allocation3], %s199
        %s201 = sand.u32 %s41, 1
        %s202 = smul.addr %s201, 8
        %s203 = scalar_lea.vmem [#allocation2], %s202
        // Predicated region
        $region33: #{tpu_custom_call.1} parent=31 // pred_check
          %p204 = pneg %p54
        $region34: #{tpu_custom_call.1} parent=31 // pred_check_branch
          %206 = sbr.rel (%p204) target = $region36
        $region35: #{tpu_custom_call.1} parent=31 // pred_region
          %207 = dma.done %s200, 128
        $region36: #{tpu_custom_call.1} parent=31 // pred_fallthru
          _
        // Predicated region
        $region37: #{tpu_custom_call.1} parent=31 // pred_check
          %p208 = pneg %p80
        $region38: #{tpu_custom_call.1} parent=31 // pred_check_branch
          %210 = sbr.rel (%p208) target = $region40
        $region39: #{tpu_custom_call.1} parent=31 // pred_region
          %211 = dma.done [#allocation6], 512
        $region40: #{tpu_custom_call.1} parent=31 // pred_fallthru
          _
        %s212 = sand.u32 %s41, 1
        %s213 = scalar_lea.sflag [#allocation3], %s212
        %s214 = sand.u32 %s41, 1
        %s215 = smul.addr %s214, 8
        %s216 = scalar_lea.vmem [#allocation2], %s215
        %p217 = pneg %p54
        %p218 = pneg %p51
        %p219 = pneg %p80
        %p220 = pneg %p77
        %p221 = scmp.lt.s32.totalorder %s26, 0
        %s222 = scalar_select %p221, %s26, 0
        %s223 = scalar_lea.vmem %s2, %s222
        %p224 = pneg %p106
        %p225 = pneg %p103
        %p226 = pneg %p134
        %p227 = pneg %p131
        %s228 = sand.u32 %s121, 1
        %s229 = scalar_lea.sflag [#allocation4], %s228
        %s230 = sand.u32 %s121, 1
        %s231 = smul.addr %s230, 8
        %s232 = scalar_lea.vmem [#allocation7], %s231
        %p233 = scmp.lt.s32.totalorder %s26, 0
        %s234 = scalar_select %p233, %s26, 0
        %s235 = scalar_lea.vmem %s2, %s234
        %v236 = vld [vmem:[%s203] sm:$0xff]
        %v237 = vld [vmem:[#allocation5] sm:$0xff]
        %v238 = vld [vmem:[#allocation5 + $0x8] sm:$0xff]
        %v239 = vld [vmem:[#allocation5 + $0x10] sm:$0xff]
        %v240 = vld [vmem:[#allocation5 + $0x18] sm:$0xff]
        %v241 = vld [vmem:[%s235] sm:$0x1]
        %v243 = vlaneseq
        %v244 = vshrl.u32 %v243, 7
        %v245 = vsub.s32 0, %v244
        %v246 = vrot.slane %v241, %v245
        %vm248 = vcmask 261120
        %v250 = vsel %vm248, %v236, 0
        %252 = vmatprep.subr.mxu0 0.0
        %253 = vmatpush1.msra.mxu0 %v237
        %254 = vmatprep.subr.mxu0 0.0
        %255 = vmatpush1.msra.mxu0 %v238
        %256 = vmatprep.subr.mxu0 0.0
        %257 = vmatpush1.msra.mxu0 %v239
        %258 = vmatprep.subr.mxu0 0.0
        %259 = vmatpush1.msra.mxu0 %v240
        %260 = vmatprep.subr.mxu0 0.0
        %261 = vmatpush1.msra.mxu0 0.0
        %262 = vmatprep.subr.mxu0 0.0
        %263 = vmatpush1.msra.mxu0 0.0
        %264 = vmatprep.subr.mxu0 0.0
        %265 = vmatpush1.msra.mxu0 0.0
        %266 = vmatprep.subr.mxu0 0.0
        %267 = vmatpush1.msra.mxu0 0.0
        %268 = vmatprep.subr.mxu0 0.0
        %269 = vmatpush1.msra.mxu0 0.0
        %270 = vmatprep.subr.mxu0 0.0
        %271 = vmatpush1.msra.mxu0 0.0
        %272 = vmatprep.subr.mxu0 0.0
        %273 = vmatpush1.msra.mxu0 0.0
        %274 = vmatprep.subr.mxu0 0.0
        %275 = vmatpush1.msra.mxu0 0.0
        %276 = vmatprep.subr.mxu0 0.0
        %277 = vmatpush1.msra.mxu0 0.0
        %278 = vmatprep.subr.mxu0 0.0
        %279 = vmatpush1.msra.mxu0 0.0
        %280 = vmatprep.subr.mxu0 0.0
        %281 = vmatpush1.msra.mxu0 0.0
        %282 = vmatprep.subr.mxu0 0.0
        %283 = vmatpush1.msra.mxu0 0.0
        %284 = vmatprep.subr.mxu0 0.0
        %285 = vmatpush1.msra.mxu0 0.0
        %286 = vmatprep.subr.mxu0 0.0
        %287 = vmatpush1.msra.mxu0 0.0
        %288 = vmatprep.subr.mxu0 0.0
        %289 = vmatpush1.msra.mxu0 0.0
        %290 = vmatprep.subr.mxu0 0.0
        %291 = vmatpush1.msra.mxu0 0.0
        %292 = vmatprep.subr.mxu0 0.0
        %293 = vmatpush1.msra.mxu0 0.0
        %294 = vmatprep.subr.mxu0 0.0
        %295 = vmatpush1.msra.mxu0 0.0
        %296 = vmatprep.subr.mxu0 0.0
        %297 = vmatpush1.msra.mxu0 0.0
        %298 = vmatprep.subr.mxu0 0.0
        %299 = vmatpush1.msra.mxu0 0.0
        %300 = vmatprep.subr.mxu0 0.0
        %301 = vmatpush1.msra.mxu0 0.0
        %302 = vmatprep.subr.mxu0 0.0
        %303 = vmatpush1.msra.mxu0 0.0
        %304 = vmatprep.subr.mxu0 0.0
        %305 = vmatpush1.msra.mxu0 0.0
        %306 = vmatprep.subr.mxu0 0.0
        %307 = vmatpush1.msra.mxu0 0.0
        %308 = vmatprep.subr.mxu0 0.0
        %309 = vmatpush1.msra.mxu0 0.0
        %310 = vmatprep.subr.mxu0 0.0
        %311 = vmatpush1.msra.mxu0 0.0
        %312 = vmatprep.subr.mxu0 0.0
        %313 = vmatpush1.msra.mxu0 0.0
        %314 = vmatprep.subr.mxu0 0.0
        %315 = vmatpush1.msra.mxu0 0.0
        %316 = vmatprep.mubr.f32.mxu0 0.0
        %317 = vmatmul.mubr.f32.gmra.mrb[0].mxu0 %v250
        %v318 = vpop.f32.mrb[0].mxu0
        %v319 = vadd.f32 %v246, %v318
        %v320 = vpop.f32.mrb[0].mxu0
        %321 = vdwg.mxu0
        %322 = vst [vmem:[%s232] sm:$0xff] %v319
        %s323 = sand.u32 %s121, 1
        %s324 = scalar_lea.sflag [#allocation4], %s323
        %s325 = sand.u32 %s121, 1
        %s326 = smul.addr %s325, 8
        %s327 = scalar_lea.vmem [#allocation7], %s326
        // Predicated region
        $region41: #{tpu_custom_call.1} parent=31 // pred_check
          %p328 = pneg %p131
        $region42: #{tpu_custom_call.1} parent=31 // pred_check_branch
          %330 = sbr.rel (%p328) target = $region44
        $region43: #{tpu_custom_call.1} parent=31 // pred_region
          %s332 = ssub.s32 128, 128
          %333 = vsyncadd %s324, %s332
          %s334 = sadd.s32 %s26, %s25
          %s335 = smul.addr %s334, 128
          %s336 = scalar_lea.hbm %s3, %s335
          %s338 = sshll.u32 %s327, 4
          %s339 = int_to_ptr.vmem [resolvable:$true] %s338
          %341 = dma.vmem_to_hbm [thread:$0]  %s339, 128, %s336, %s324
        $region44: #{tpu_custom_call.1} parent=31 // pred_fallthru
          _
      $region32: #{tpu_custom_call.1} parent=5 // pred_fallthru
        _
      %p342 = scmp.le.s32.totalorder 2, %s16
      // Predicated region
      $region45: #{tpu_custom_call.1} parent=5 // pred_check
        %p343 = pneg %p342
      $region46: #{tpu_custom_call.1} parent=5 // pred_check_branch
        %345 = sbr.rel (%p343) target = $region48
      $region47: #{tpu_custom_call.1} parent=5 // pred_region
        %s346 = ssub.s32 %s16, 2
        // Predicated region
        $region49: #{tpu_custom_call.1} parent=47 // pred_check
          %p347 = pneg %p137
        $region50: #{tpu_custom_call.1} parent=47 // pred_check_branch
          %349 = sbr.rel (%p347) target = $region52
        $region51: #{tpu_custom_call.1} parent=47 // pred_region
          %s350 = sand.u32 %s122, 1
          %s351 = scalar_lea.sflag [#allocation4], %s350
          %s352 = sand.u32 %s122, 1
          %s353 = smul.addr %s352, 8
          %s354 = scalar_lea.vmem [#allocation7], %s353
          %355 = dma.done %s351, 128
        $region52: #{tpu_custom_call.1} parent=47 // pred_fallthru
          _
      $region48: #{tpu_custom_call.1} parent=5 // pred_fallthru
        _
    $region6: #{tpu_custom_call.1} parent=1 // loop_footer
      %s20 = sadd.s32 1, %s16
    $region7: #{tpu_custom_call.1} parent=1 // loop_footer_branch
      %15 = sbr.rel target = $region3
    $region8: #{tpu_custom_call.1} parent=1 // loop_exit
      _
    %356 = vsyncpa [#allocation3], 1
    %s357 = scalar_lea.sflag [#allocation3], 1
    %358 = vsyncpa %s357, 1
    %359 = vsyncpa [#allocation6], 1
    %360 = vsyncpa [#allocation4], 1
    %s361 = scalar_lea.sflag [#allocation4], 1
    %362 = vsyncpa %s361, 1

</llo_original>
